<compile_context>
chip_gen: v6e
topology: v6e:2x2x1
jax: 0.10.0
libtpu: 0.0.40
codegen_flags: <defaults>
</compile_context>

<pallas_src>
import jax
import jax.numpy as jnp
from jax.experimental import pallas as pl
from jax.experimental.pallas import tpu as pltpu
import numpy as np


# ----------------------------------------------------------------------------
# Kernel: feature-major, batch-folded activations of shape (F*feat, TILE_COLS).
# ----------------------------------------------------------------------------
def _mlp_kernel(x_ref, s_ref,
                w1_ref, b1_ref,
                w2a_ref, w2b_ref, b2_ref,
                w3_ref, b3_ref,
                w4_ref, b4_ref,
                w5_ref, b5_ref,
                o_ref):
    f32 = jnp.float32
    bf16 = jnp.bfloat16

    x = x_ref[...]                      # (F*in_features, TILE_COLS) bf16
    s = s_ref[...]                      # (F*3,          TILE_COLS) bf16

    # fcl: Linear(in_features -> 30) + ReLU   (block-diag folded)
    h = jnp.dot(w1_ref[...], x, preferred_element_type=f32) + b1_ref[...]
    h = jnp.maximum(h, 0.0).astype(bf16)            # (F*30, TILE_COLS)

    # fcl2[0]: Linear(33 -> 30) on cat([h, shift_flat]) + ReLU.
    #   cat([h, s]) @ W2 == h @ W2a + s @ W2b  (both on the MXU, folded).
    h = (jnp.dot(w2a_ref[...], h, preferred_element_type=f32)
         + jnp.dot(w2b_ref[...], s, preferred_element_type=f32)
         + b2_ref[...])
    h = jnp.maximum(h, 0.0).astype(bf16)            # (F*30, TILE_COLS)

    # fcl2[2]: Linear(30 -> 30) + ReLU
    h = jnp.dot(w3_ref[...], h, preferred_element_type=f32) + b3_ref[...]
    h = jnp.maximum(h, 0.0).astype(bf16)            # (F*30, TILE_COLS)

    # fcl2[4]: Linear(30 -> 20) + ReLU
    h = jnp.dot(w4_ref[...], h, preferred_element_type=f32) + b4_ref[...]
    h = jnp.maximum(h, 0.0).astype(bf16)            # (F*20, TILE_COLS)

    # fcl2[6]: Linear(20 -> num_outputs), no activation
    o_ref[...] = (jnp.dot(w5_ref[...], h, preferred_element_type=f32)
                  + b5_ref[...]).astype(o_ref.dtype)  # (F*num_outputs, TILE_COLS)


def _round_up(n, m):
    return ((n + m - 1) // m) * m


def _default_fold():
    # MXU depth: 256 on v6e/v7x (7*33 <= 256), 128 on v5e and older (3*33 <= 128).
    try:
        kind = jax.devices()[0].device_kind.lower()
    except Exception:
        return 3
    if ("v6" in kind) or ("v7" in kind):
        return 7
    return 3


# ----------------------------------------------------------------------------
# Wrapper: batch-tiled pallas_call, fold-factor batch packing, resident weights.
# ----------------------------------------------------------------------------
def fully_connected_forward(x, shift, params, *, fold=None, tile_cols=2048):
    """x: (B, in_features); shift: (B, ...) whose flatten(start_dim=1) is (B, 3)."""
    B, in_features = x.shape
    shift_flat = shift.reshape(B, -1)          # torch.flatten(shift, start_dim=1)
    assert shift_flat.shape[1] == 3, "module assumes flattened shift has 3 features"

    F = _default_fold() if fold is None else fold
    assert F >= 1
    assert tile_cols % 128 == 0, "batch tile must be a multiple of 128 lanes"

    (w1, b1, w2, b2, w3, b3, w4, b4, w5, b5) = params
    num_outputs = w5.shape[1]

    # ---- batch geometry ------------------------------------------------------
    # Each of the F fold lanes carries cols_total batch elements (lane axis).
    cols_min = _round_up(max(1, -(-B // F)), 128)          # ceil(B/F), 128-aligned
    tile_cols = min(tile_cols, cols_min)
    # Prefer >= 2 grid steps when the batch allows it (megacore sharding on v7x).
    if tile_cols == cols_min and cols_min >= 256 and cols_min % 256 == 0:
        tile_cols = cols_min // 2
    cols_total = _round_up(cols_min, tile_cols)
    B_pad = F * cols_total
    grid = (cols_total // tile_cols,)

    # ---- fold weights block-diagonally, bf16 for the MXU ---------------------
    def fold_w(w_t):          # w_t: (out, in) -> (F*out, F*in) block-diagonal bf16
        return jnp.kron(jnp.eye(F, dtype=jnp.float32),
                        w_t.astype(jnp.float32)).astype(jnp.bfloat16)

    def fold_b(b):            # -> (F*out, 1) f32 (added post f32 accumulation)
        return jnp.tile(jnp.asarray(b, jnp.float32).reshape(-1, 1), (F, 1))

    w1_f = fold_w(w1.T)                      # (F*30, F*in_features)
    w2a_f = fold_w(w2[:30, :].T)             # (F*30, F*30)   rows multiplying h
    w2b_f = fold_w(w2[30:, :].T)             # (F*30, F*3)    rows multiplying shift
    w3_f = fold_w(w3.T)                      # (F*30, F*30)
    w4_f = fold_w(w4.T)                      # (F*20, F*30)
    w5_f = fold_w(w5.T)                      # (F*num_outputs, F*20)
    b1_f, b2_f, b3_f, b4_f, b5_f = map(fold_b, (b1, b2, b3, b4, b5))

    # ---- fold activations: (B, feat) -> (F*feat, cols_total) bf16, one pass --
    def fold_act(a, feat):
        a = jnp.pad(a.astype(jnp.bfloat16), ((0, B_pad - B), (0, 0)))
        return (a.reshape(F, cols_total, feat)
                 .transpose(0, 2, 1)
                 .reshape(F * feat, cols_total))

    x_f = fold_act(x, in_features)
    s_f = fold_act(shift_flat, 3)

    # ---- BlockSpecs -----------------------------------------------------------
    def batch_spec(rows):
        # Feature axis = full extent (small sublane dim), batch tile lane-dense.
        return pl.BlockSpec((rows, tile_cols), lambda i: (0, i))

    def resident_spec(a):
        # Constant block index -> stays resident in VMEM across grid steps.
        return pl.BlockSpec(a.shape, lambda i: (0, 0))

    weight_ops = (w1_f, b1_f, w2a_f, w2b_f, b2_f,
                  w3_f, b3_f, w4_f, b4_f, w5_f, b5_f)
    in_specs = ([batch_spec(F * in_features), batch_spec(F * 3)]
                + [resident_spec(w) for w in weight_ops])

    out_f = pl.pallas_call(
        _mlp_kernel,
        grid=grid,
        out_shape=jax.ShapeDtypeStruct((F * num_outputs, cols_total), jnp.float32),
        in_specs=in_specs,
        out_specs=batch_spec(F * num_outputs),
        compiler_params=pltpu.CompilerParams(
            dimension_semantics=("parallel",)),
    )(x_f, s_f, *weight_ops)

    # Unfold + strip padding (tiny: B x num_outputs).
    out = (out_f.reshape(F, num_outputs, cols_total)
                .transpose(0, 2, 1)
                .reshape(B_pad, num_outputs))
    return out[:B]


# ----------------------------------------------------------------------------
# Parameter init matching the PyTorch module:
#   weights_init -> kaiming_uniform_ (defaults) -> U(-sqrt(6/fan_in), +sqrt(6/fan_in))
#   bias         -> nn.Linear default          -> U(-1/sqrt(fan_in), +1/sqrt(fan_in))
# Weights stored (in_features, out_features); real PyTorch (out, in) weights
# would need a transpose before calling fully_connected_forward.
# ----------------------------------------------------------------------------
def _kaiming_uniform(key, fan_in, fan_out):
    bound = np.sqrt(6.0 / fan_in)
    return jax.random.uniform(key, (fan_in, fan_out), jnp.float32, -bound, bound)


def _bias_init(key, fan_in, fan_out):
    bound = 1.0 / np.sqrt(fan_in)
    return jax.random.uniform(key, (1, fan_out), jnp.float32, -bound, bound)


def init_params(key, in_features, num_outputs):
    out_features = [30, 30, 30, 20]
    dims = [(in_features, out_features[0]),
            (out_features[0] + 3, out_features[1]),
            (out_features[1], out_features[2]),
            (out_features[2], out_features[3]),
            (out_features[3], num_outputs)]
    params = []
    for (fi, fo) in dims:
        key, kw, kb = jax.random.split(key, 3)
        params.append(_kaiming_uniform(kw, fi, fo))
        params.append(_bias_init(kb, fi, fo))
    return tuple(params)


def reference_forward(x, shift, params):
    (w1, b1, w2, b2, w3, b3, w4, b4, w5, b5) = params
    s = shift.reshape(x.shape[0], -1)
    h = jax.nn.relu(x @ w1 + b1)
    h = jnp.concatenate([h, s], axis=1)
    h = jax.nn.relu(h @ w2 + b2)
    h = jax.nn.relu(h @ w3 + b3)
    h = jax.nn.relu(h @ w4 + b4)
    return h @ w5 + b5


if __name__ == "__main__":
    in_features = 32
    num_outputs = 5
    batch = 2

    key = jax.random.PRNGKey(0)
    kp, kx, ks = jax.random.split(key, 3)
    params = init_params(kp, in_features, num_outputs)

    x = jax.random.normal(kx, (batch, in_features), jnp.float32)
    shift = jax.random.normal(ks, (batch, 3), jnp.float32)  # flatten(start_dim=1) -> (B, 3)

    out = fully_connected_forward(x, shift, params)
    out = jax.block_until_ready(out)

    ref = reference_forward(x, shift, params)
    # bf16 matmul operands (f32 accumulation) -> loosened tolerance vs f32 ref.
    np.testing.assert_allclose(np.asarray(out), np.asarray(ref), rtol=3e-2, atol=3e-2)
    assert out.shape == (batch, num_outputs)

    print("KERNEL_OK")
</pallas_src>

<mosaic_0001>
module attributes {stable_mosaic.version = 11 : i64} {
  func.func @_mlp_kernel(%arg0: i32, %arg1: memref<96x128xbf16, #tpu.memory_space<vmem>>, %arg2: memref<9x128xbf16, #tpu.memory_space<vmem>>, %arg3: memref<90x96xbf16, #tpu.memory_space<vmem>>, %arg4: memref<90x1xf32, #tpu.memory_space<vmem>>, %arg5: memref<90x90xbf16, #tpu.memory_space<vmem>>, %arg6: memref<90x9xbf16, #tpu.memory_space<vmem>>, %arg7: memref<90x1xf32, #tpu.memory_space<vmem>>, %arg8: memref<90x90xbf16, #tpu.memory_space<vmem>>, %arg9: memref<90x1xf32, #tpu.memory_space<vmem>>, %arg10: memref<60x90xbf16, #tpu.memory_space<vmem>>, %arg11: memref<60x1xf32, #tpu.memory_space<vmem>>, %arg12: memref<15x60xbf16, #tpu.memory_space<vmem>>, %arg13: memref<15x1xf32, #tpu.memory_space<vmem>>, %arg14: memref<15x128xf32, #tpu.memory_space<vmem>>) attributes {dimension_semantics = [#tpu.dimension_semantics<parallel>], iteration_bounds = array<i64: 1>, scalar_prefetch = 0 : i64, scratch_operands = 0 : i64, tpu.core_type = #tpu.core_type<tc>, window_params = [{transform_indices = @transform_0, window_bounds = array<i64: 96, 128>}, {transform_indices = @transform_1, window_bounds = array<i64: 9, 128>}, {pipeline_mode = #tpu.pipeline_mode<synchronous>, transform_indices = @transform_2, window_bounds = array<i64: 90, 96>}, {pipeline_mode = #tpu.pipeline_mode<synchronous>, transform_indices = @transform_3, window_bounds = array<i64: 90, 1>}, {pipeline_mode = #tpu.pipeline_mode<synchronous>, transform_indices = @transform_4, window_bounds = array<i64: 90, 90>}, {pipeline_mode = #tpu.pipeline_mode<synchronous>, transform_indices = @transform_5, window_bounds = array<i64: 90, 9>}, {pipeline_mode = #tpu.pipeline_mode<synchronous>, transform_indices = @transform_6, window_bounds = array<i64: 90, 1>}, {pipeline_mode = #tpu.pipeline_mode<synchronous>, transform_indices = @transform_7, window_bounds = array<i64: 90, 90>}, {pipeline_mode = #tpu.pipeline_mode<synchronous>, transform_indices = @transform_8, window_bounds = array<i64: 90, 1>}, {pipeline_mode = #tpu.pipeline_mode<synchronous>, transform_indices = @transform_9, window_bounds = array<i64: 60, 90>}, {pipeline_mode = #tpu.pipeline_mode<synchronous>, transform_indices = @transform_10, window_bounds = array<i64: 60, 1>}, {pipeline_mode = #tpu.pipeline_mode<synchronous>, transform_indices = @transform_11, window_bounds = array<i64: 15, 60>}, {pipeline_mode = #tpu.pipeline_mode<synchronous>, transform_indices = @transform_12, window_bounds = array<i64: 15, 1>}, {transform_indices = @transform_13, window_bounds = array<i64: 15, 128>}]} {
    %c0 = arith.constant 0 : index
    %c0_0 = arith.constant 0 : index
    %0 = vector.load %arg1[%c0, %c0_0] : memref<96x128xbf16, #tpu.memory_space<vmem>>, vector<96x128xbf16>
    %c0_1 = arith.constant 0 : index
    %c0_2 = arith.constant 0 : index
    %1 = vector.load %arg2[%c0_1, %c0_2] : memref<9x128xbf16, #tpu.memory_space<vmem>>, vector<9x128xbf16>
    %c0_3 = arith.constant 0 : index
    %c0_4 = arith.constant 0 : index
    %2 = vector.load %arg3[%c0_3, %c0_4] : memref<90x96xbf16, #tpu.memory_space<vmem>>, vector<90x96xbf16>
    %cst = arith.constant dense<0.000000e+00> : vector<90x128xf32>
    %3 = tpu.matmul %2, %0, %cst {dimension_numbers = #tpu.dot_dimension_numbers<[1], [0], [0], [1], [0, 0, 1, 1], [], []>} : vector<90x96xbf16>, vector<96x128xbf16>, vector<90x128xf32> -> vector<90x128xf32>
    %c0_5 = arith.constant 0 : index
    %c0_6 = arith.constant 0 : index
    %4 = vector.load %arg4[%c0_5, %c0_6] : memref<90x1xf32, #tpu.memory_space<vmem>>, vector<90x1xf32>
    %5 = vector.broadcast %4 : vector<90x1xf32> to vector<90x128xf32>
    %6 = arith.addf %3, %5 : vector<90x128xf32>
    %cst_7 = arith.constant 0.000000e+00 : f32
    %7 = vector.broadcast %cst_7 : f32 to vector<90x128xf32>
    %8 = arith.maximumf %6, %7 : vector<90x128xf32>
    %9 = arith.truncf %8 : vector<90x128xf32> to vector<90x128xbf16>
    %c0_8 = arith.constant 0 : index
    %c0_9 = arith.constant 0 : index
    %10 = vector.load %arg5[%c0_8, %c0_9] : memref<90x90xbf16, #tpu.memory_space<vmem>>, vector<90x90xbf16>
    %cst_10 = arith.constant dense<0.000000e+00> : vector<90x128xf32>
    %11 = tpu.matmul %10, %9, %cst_10 {dimension_numbers = #tpu.dot_dimension_numbers<[1], [0], [0], [1], [0, 0, 1, 1], [], []>} : vector<90x90xbf16>, vector<90x128xbf16>, vector<90x128xf32> -> vector<90x128xf32>
    %c0_11 = arith.constant 0 : index
    %c0_12 = arith.constant 0 : index
    %12 = vector.load %arg6[%c0_11, %c0_12] : memref<90x9xbf16, #tpu.memory_space<vmem>>, vector<90x9xbf16>
    %cst_13 = arith.constant dense<0.000000e+00> : vector<90x128xf32>
    %13 = tpu.matmul %12, %1, %cst_13 {dimension_numbers = #tpu.dot_dimension_numbers<[1], [0], [0], [1], [0, 0, 1, 1], [], []>} : vector<90x9xbf16>, vector<9x128xbf16>, vector<90x128xf32> -> vector<90x128xf32>
    %14 = arith.addf %11, %13 : vector<90x128xf32>
    %c0_14 = arith.constant 0 : index
    %c0_15 = arith.constant 0 : index
    %15 = vector.load %arg7[%c0_14, %c0_15] : memref<90x1xf32, #tpu.memory_space<vmem>>, vector<90x1xf32>
    %16 = vector.broadcast %15 : vector<90x1xf32> to vector<90x128xf32>
    %17 = arith.addf %14, %16 : vector<90x128xf32>
    %cst_16 = arith.constant 0.000000e+00 : f32
    %18 = vector.broadcast %cst_16 : f32 to vector<90x128xf32>
    %19 = arith.maximumf %17, %18 : vector<90x128xf32>
    %20 = arith.truncf %19 : vector<90x128xf32> to vector<90x128xbf16>
    %c0_17 = arith.constant 0 : index
    %c0_18 = arith.constant 0 : index
    %21 = vector.load %arg8[%c0_17, %c0_18] : memref<90x90xbf16, #tpu.memory_space<vmem>>, vector<90x90xbf16>
    %cst_19 = arith.constant dense<0.000000e+00> : vector<90x128xf32>
    %22 = tpu.matmul %21, %20, %cst_19 {dimension_numbers = #tpu.dot_dimension_numbers<[1], [0], [0], [1], [0, 0, 1, 1], [], []>} : vector<90x90xbf16>, vector<90x128xbf16>, vector<90x128xf32> -> vector<90x128xf32>
    %c0_20 = arith.constant 0 : index
    %c0_21 = arith.constant 0 : index
    %23 = vector.load %arg9[%c0_20, %c0_21] : memref<90x1xf32, #tpu.memory_space<vmem>>, vector<90x1xf32>
    %24 = vector.broadcast %23 : vector<90x1xf32> to vector<90x128xf32>
    %25 = arith.addf %22, %24 : vector<90x128xf32>
    %cst_22 = arith.constant 0.000000e+00 : f32
    %26 = vector.broadcast %cst_22 : f32 to vector<90x128xf32>
    %27 = arith.maximumf %25, %26 : vector<90x128xf32>
    %28 = arith.truncf %27 : vector<90x128xf32> to vector<90x128xbf16>
    %c0_23 = arith.constant 0 : index
    %c0_24 = arith.constant 0 : index
    %29 = vector.load %arg10[%c0_23, %c0_24] : memref<60x90xbf16, #tpu.memory_space<vmem>>, vector<60x90xbf16>
    %cst_25 = arith.constant dense<0.000000e+00> : vector<60x128xf32>
    %30 = tpu.matmul %29, %28, %cst_25 {dimension_numbers = #tpu.dot_dimension_numbers<[1], [0], [0], [1], [0, 0, 1, 1], [], []>} : vector<60x90xbf16>, vector<90x128xbf16>, vector<60x128xf32> -> vector<60x128xf32>
    %c0_26 = arith.constant 0 : index
    %c0_27 = arith.constant 0 : index
    %31 = vector.load %arg11[%c0_26, %c0_27] : memref<60x1xf32, #tpu.memory_space<vmem>>, vector<60x1xf32>
    %32 = vector.broadcast %31 : vector<60x1xf32> to vector<60x128xf32>
    %33 = arith.addf %30, %32 : vector<60x128xf32>
    %cst_28 = arith.constant 0.000000e+00 : f32
    %34 = vector.broadcast %cst_28 : f32 to vector<60x128xf32>
    %35 = arith.maximumf %33, %34 : vector<60x128xf32>
    %36 = arith.truncf %35 : vector<60x128xf32> to vector<60x128xbf16>
    %c0_29 = arith.constant 0 : index
    %c0_30 = arith.constant 0 : index
    %37 = vector.load %arg12[%c0_29, %c0_30] : memref<15x60xbf16, #tpu.memory_space<vmem>>, vector<15x60xbf16>
    %cst_31 = arith.constant dense<0.000000e+00> : vector<15x128xf32>
    %38 = tpu.matmul %37, %36, %cst_31 {dimension_numbers = #tpu.dot_dimension_numbers<[1], [0], [0], [1], [0, 0, 1, 1], [], []>} : vector<15x60xbf16>, vector<60x128xbf16>, vector<15x128xf32> -> vector<15x128xf32>
    %c0_32 = arith.constant 0 : index
    %c0_33 = arith.constant 0 : index
    %39 = vector.load %arg13[%c0_32, %c0_33] : memref<15x1xf32, #tpu.memory_space<vmem>>, vector<15x1xf32>
    %40 = vector.broadcast %39 : vector<15x1xf32> to vector<15x128xf32>
    %41 = arith.addf %38, %40 : vector<15x128xf32>
    %c0_34 = arith.constant 0 : index
    %c0_35 = arith.constant 0 : index
    %42 = vector.load %arg14[%c0_34, %c0_35] : memref<15x128xf32, #tpu.memory_space<vmem>>, vector<15x128xf32>
    tpu.vector_store %arg14[%c0_34, %c0_35], %41 {strides = array<i32>} : memref<15x128xf32, #tpu.memory_space<vmem>>, vector<15x128xf32>,
    return
  }
  func.func @transform_0(%arg0: i32) -> (i32, i32) {
    %c0_i32 = arith.constant 0 : i32
    %c0_i32_0 = arith.constant 0 : i32
    return %c0_i32, %arg0 : i32, i32
  }
  func.func @transform_1(%arg0: i32) -> (i32, i32) {
    %c0_i32 = arith.constant 0 : i32
    %c0_i32_0 = arith.constant 0 : i32
    return %c0_i32, %arg0 : i32, i32
  }
  func.func @transform_2(%arg0: i32) -> (i32, i32) {
    %c0_i32 = arith.constant 0 : i32
    %c0_i32_0 = arith.constant 0 : i32
    %c0_i32_1 = arith.constant 0 : i32
    return %c0_i32, %c0_i32_0 : i32, i32
  }
  func.func @transform_3(%arg0: i32) -> (i32, i32) {
    %c0_i32 = arith.constant 0 : i32
    %c0_i32_0 = arith.constant 0 : i32
    %c0_i32_1 = arith.constant 0 : i32
    return %c0_i32, %c0_i32_0 : i32, i32
  }
  func.func @transform_4(%arg0: i32) -> (i32, i32) {
    %c0_i32 = arith.constant 0 : i32
    %c0_i32_0 = arith.constant 0 : i32
    %c0_i32_1 = arith.constant 0 : i32
    return %c0_i32, %c0_i32_0 : i32, i32
  }
  func.func @transform_5(%arg0: i32) -> (i32, i32) {
    %c0_i32 = arith.constant 0 : i32
    %c0_i32_0 = arith.constant 0 : i32
    %c0_i32_1 = arith.constant 0 : i32
    return %c0_i32, %c0_i32_0 : i32, i32
  }
  func.func @transform_6(%arg0: i32) -> (i32, i32) {
    %c0_i32 = arith.constant 0 : i32
    %c0_i32_0 = arith.constant 0 : i32
    %c0_i32_1 = arith.constant 0 : i32
    return %c0_i32, %c0_i32_0 : i32, i32
  }
  func.func @transform_7(%arg0: i32) -> (i32, i32) {
    %c0_i32 = arith.constant 0 : i32
    %c0_i32_0 = arith.constant 0 : i32
    %c0_i32_1 = arith.constant 0 : i32
    return %c0_i32, %c0_i32_0 : i32, i32
  }
  func.func @transform_8(%arg0: i32) -> (i32, i32) {
    %c0_i32 = arith.constant 0 : i32
    %c0_i32_0 = arith.constant 0 : i32
    %c0_i32_1 = arith.constant 0 : i32
    return %c0_i32, %c0_i32_0 : i32, i32
  }
  func.func @transform_9(%arg0: i32) -> (i32, i32) {
    %c0_i32 = arith.constant 0 : i32
    %c0_i32_0 = arith.constant 0 : i32
    %c0_i32_1 = arith.constant 0 : i32
    return %c0_i32, %c0_i32_0 : i32, i32
  }
  func.func @transform_10(%arg0: i32) -> (i32, i32) {
    %c0_i32 = arith.constant 0 : i32
    %c0_i32_0 = arith.constant 0 : i32
    %c0_i32_1 = arith.constant 0 : i32
    return %c0_i32, %c0_i32_0 : i32, i32
  }
  func.func @transform_11(%arg0: i32) -> (i32, i32) {
    %c0_i32 = arith.constant 0 : i32
    %c0_i32_0 = arith.constant 0 : i32
    %c0_i32_1 = arith.constant 0 : i32
    return %c0_i32, %c0_i32_0 : i32, i32
  }
  func.func @transform_12(%arg0: i32) -> (i32, i32) {
    %c0_i32 = arith.constant 0 : i32
    %c0_i32_0 = arith.constant 0 : i32
    %c0_i32_1 = arith.constant 0 : i32
    return %c0_i32, %c0_i32_0 : i32, i32
  }
  func.func @transform_13(%arg0: i32) -> (i32, i32) {
    %c0_i32 = arith.constant 0 : i32
    %c0_i32_0 = arith.constant 0 : i32
    return %c0_i32, %arg0 : i32, i32
  }
}

</mosaic_0001>

<llo_original>
// kernel: tpu_custom_call.1
$region0: #{tpu_custom_call.1}
  #allocation0 [shape = 'u32[]', space=smem, size = 0x4, offset = 0x4, fixed_abs, tag = 'smem constant byte address 0x4 - core index']
  #allocation1 [shape = 'u32[144,128]{1,0:T(1,128)}', space=vmem, size = 0x12000, scoped, tag = 'internal scratch']
  %s0 = inlined_call_operand.vmem [shape: bf16[96,128], index: 0, kind: input, shape index: {}]
  %s1 = inlined_call_operand.vmem [shape: bf16[9,128], index: 1, kind: input, shape index: {}]
  %s2 = inlined_call_operand.vmem [shape: bf16[90,96], index: 2, kind: input, shape index: {}]
  %s3 = inlined_call_operand.vmem [shape: f32[90,1], index: 3, kind: input, shape index: {}]
  %s4 = inlined_call_operand.vmem [shape: bf16[90,90], index: 4, kind: input, shape index: {}]
  %s5 = inlined_call_operand.vmem [shape: bf16[90,9], index: 5, kind: input, shape index: {}]
  %s6 = inlined_call_operand.vmem [shape: f32[90,1], index: 6, kind: input, shape index: {}]
  %s7 = inlined_call_operand.vmem [shape: bf16[90,90], index: 7, kind: input, shape index: {}]
  %s8 = inlined_call_operand.vmem [shape: f32[90,1], index: 8, kind: input, shape index: {}]
  %s9 = inlined_call_operand.vmem [shape: bf16[60,90], index: 9, kind: input, shape index: {}]
  %s10 = inlined_call_operand.vmem [shape: f32[60,1], index: 10, kind: input, shape index: {}]
  %s11 = inlined_call_operand.vmem [shape: bf16[15,60], index: 11, kind: input, shape index: {}]
  %s12 = inlined_call_operand.vmem [shape: f32[15,1], index: 12, kind: input, shape index: {}]
  %s13 = inlined_call_operand.hbm [shape: f32[15,128], index: 13, kind: output, shape index: {}]
  %s14 = sld [smem:[#allocation0]]
  $region62: #{tpu_custom_call.1} parent=0
    _
  %s16 = ssub.s32 1, %s14
  %s17 = scalar_select 0, %s16, %s14
  $region1: #{tpu_custom_call.1} parent=0
    #allocation2 [shape = 'u8[8192]{0}', space=vmem, size = 0x2000, scoped, tag = 'output window, operand 0, single buffered']
    #allocation3 [shape = 's32[1]{0}', space=sflag, size = 0x4, scoped, tag = 'scoped memory for tpu_custom_call.1']
    %18 = vsyncpa [#allocation3], 0
    // Predicated region
    $region2: #{tpu_custom_call.1} parent=1 // pred_check
      _
    $region3: #{tpu_custom_call.1} parent=1 // pred_check_branch
      %20 = sbr.rel (0) target = $region5
    $region4: #{tpu_custom_call.1} parent=1 // pred_region
      _
    $region5: #{tpu_custom_call.1} parent=1 // pred_fallthru
      _
    // Predicated region
    $region6: #{tpu_custom_call.1} parent=1 // pred_check
      _
    $region7: #{tpu_custom_call.1} parent=1 // pred_check_branch
      %22 = sbr.rel (0) target = $region9
    $region8: #{tpu_custom_call.1} parent=1 // pred_region
      _
    $region9: #{tpu_custom_call.1} parent=1 // pred_fallthru
      _
    // Predicated region
    $region10: #{tpu_custom_call.1} parent=1 // pred_check
      _
    $region11: #{tpu_custom_call.1} parent=1 // pred_check_branch
      %24 = sbr.rel (0) target = $region13
    $region12: #{tpu_custom_call.1} parent=1 // pred_region
      _
    $region13: #{tpu_custom_call.1} parent=1 // pred_fallthru
      _
    // Predicated region
    $region14: #{tpu_custom_call.1} parent=1 // pred_check
      _
    $region15: #{tpu_custom_call.1} parent=1 // pred_check_branch
      %26 = sbr.rel (0) target = $region17
    $region16: #{tpu_custom_call.1} parent=1 // pred_region
      _
    $region17: #{tpu_custom_call.1} parent=1 // pred_fallthru
      _
    // Predicated region
    $region18: #{tpu_custom_call.1} parent=1 // pred_check
      _
    $region19: #{tpu_custom_call.1} parent=1 // pred_check_branch
      %28 = sbr.rel (0) target = $region21
    $region20: #{tpu_custom_call.1} parent=1 // pred_region
      _
    $region21: #{tpu_custom_call.1} parent=1 // pred_fallthru
      _
    // Predicated region
    $region22: #{tpu_custom_call.1} parent=1 // pred_check
      _
    $region23: #{tpu_custom_call.1} parent=1 // pred_check_branch
      %30 = sbr.rel (0) target = $region25
    $region24: #{tpu_custom_call.1} parent=1 // pred_region
      _
    $region25: #{tpu_custom_call.1} parent=1 // pred_fallthru
      _
    // Predicated region
    $region26: #{tpu_custom_call.1} parent=1 // pred_check
      _
    $region27: #{tpu_custom_call.1} parent=1 // pred_check_branch
      %32 = sbr.rel (0) target = $region29
    $region28: #{tpu_custom_call.1} parent=1 // pred_region
      _
    $region29: #{tpu_custom_call.1} parent=1 // pred_fallthru
      _
    // Predicated region
    $region30: #{tpu_custom_call.1} parent=1 // pred_check
      _
    $region31: #{tpu_custom_call.1} parent=1 // pred_check_branch
      %34 = sbr.rel (0) target = $region33
    $region32: #{tpu_custom_call.1} parent=1 // pred_region
      _
    $region33: #{tpu_custom_call.1} parent=1 // pred_fallthru
      _
    // Predicated region
    $region34: #{tpu_custom_call.1} parent=1 // pred_check
      _
    $region35: #{tpu_custom_call.1} parent=1 // pred_check_branch
      %36 = sbr.rel (0) target = $region37
    $region36: #{tpu_custom_call.1} parent=1 // pred_region
      _
    $region37: #{tpu_custom_call.1} parent=1 // pred_fallthru
      _
    // Predicated region
    $region38: #{tpu_custom_call.1} parent=1 // pred_check
      _
    $region39: #{tpu_custom_call.1} parent=1 // pred_check_branch
      %38 = sbr.rel (0) target = $region41
    $region40: #{tpu_custom_call.1} parent=1 // pred_region
      _
    $region41: #{tpu_custom_call.1} parent=1 // pred_fallthru
      _
    // Predicated region
    $region42: #{tpu_custom_call.1} parent=1 // pred_check
      _
    $region43: #{tpu_custom_call.1} parent=1 // pred_check_branch
      %40 = sbr.rel (0) target = $region45
    $region44: #{tpu_custom_call.1} parent=1 // pred_region
      _
    $region45: #{tpu_custom_call.1} parent=1 // pred_fallthru
      _
    // Predicated region
    $region46: #{tpu_custom_call.1} parent=1 // pred_check
      _
    $region47: #{tpu_custom_call.1} parent=1 // pred_check_branch
      %42 = sbr.rel (0) target = $region49
    $region48: #{tpu_custom_call.1} parent=1 // pred_region
      _
    $region49: #{tpu_custom_call.1} parent=1 // pred_fallthru
      _
    // Predicated region
    $region50: #{tpu_custom_call.1} parent=1 // pred_check
      _
    $region51: #{tpu_custom_call.1} parent=1 // pred_check_branch
      %44 = sbr.rel (0) target = $region53
    $region52: #{tpu_custom_call.1} parent=1 // pred_region
      _
    $region53: #{tpu_custom_call.1} parent=1 // pred_fallthru
      _
    %v46 = vld [vmem:[%s0] sm:$0xf]
    %v47 = vld [vmem:[%s0 + $0x4] sm:$0xf]
    %v48 = vld [vmem:[%s0 + $0x8] sm:$0xf]
    %v49 = vld [vmem:[%s0 + $0xc] sm:$0xf]
    %v50 = vld [vmem:[%s0 + $0x10] sm:$0xf]
    %v51 = vld [vmem:[%s0 + $0x14] sm:$0xf]
    %v52 = vld [vmem:[%s0 + $0x18] sm:$0xf]
    %v53 = vld [vmem:[%s0 + $0x1c] sm:$0xf]
    %v54 = vld [vmem:[%s0 + $0x20] sm:$0xf]
    %v55 = vld [vmem:[%s0 + $0x24] sm:$0xf]
    %v56 = vld [vmem:[%s0 + $0x28] sm:$0xf]
    %v57 = vld [vmem:[%s0 + $0x2c] sm:$0xf]
    %v58 = vld [vmem:[%s1] sm:$0xf]
    %v59 = vld [vmem:[%s1 + $0x4] sm:$0x1]
    %v60 = vld [vmem:[%s2] sm:$0xf]
    %v61 = vld [vmem:[%s2 + $0x4] sm:$0xf]
    %v62 = vld [vmem:[%s2 + $0x8] sm:$0xf]
    %v63 = vld [vmem:[%s2 + $0xc] sm:$0xf]
    %v64 = vld [vmem:[%s2 + $0x10] sm:$0xf]
    %v65 = vld [vmem:[%s2 + $0x14] sm:$0xf]
    %v66 = vld [vmem:[%s2 + $0x18] sm:$0xf]
    %v67 = vld [vmem:[%s2 + $0x1c] sm:$0xf]
    %v68 = vld [vmem:[%s2 + $0x20] sm:$0xf]
    %v69 = vld [vmem:[%s2 + $0x24] sm:$0xf]
    %v70 = vld [vmem:[%s2 + $0x28] sm:$0xf]
    %v71 = vld [vmem:[%s2 + $0x2c] sm:$0x1]
    %v72 = vld [vmem:[%s3] sm:$0xff]
    %v73 = vld [vmem:[%s3 + $0x8] sm:$0xff]
    %v74 = vld [vmem:[%s3 + $0x10] sm:$0xff]
    %v75 = vld [vmem:[%s3 + $0x18] sm:$0xff]
    %v76 = vld [vmem:[%s3 + $0x20] sm:$0xff]
    %v77 = vld [vmem:[%s3 + $0x28] sm:$0xff]
    %v78 = vld [vmem:[%s3 + $0x30] sm:$0xff]
    %v79 = vld [vmem:[%s3 + $0x38] sm:$0xff]
    %v80 = vld [vmem:[%s3 + $0x40] sm:$0xff]
    %v81 = vld [vmem:[%s3 + $0x48] sm:$0xff]
    %v82 = vld [vmem:[%s3 + $0x50] sm:$0xff]
    %v83 = vld [vmem:[%s3 + $0x58] sm:$0x3]
    %85 = vset.pattern.permute.xlu0 0
    %86 = vperm.xlu0 %85, %v72
    %v87 = vpop.permute.xlu0 %86
    %90 = vset.pattern.permute.xlu0 0
    %91 = vperm.xlu0 %90, %v73
    %v92 = vpop.permute.xlu0 %91
    %95 = vset.pattern.permute.xlu0 0
    %96 = vperm.xlu0 %95, %v74
    %v97 = vpop.permute.xlu0 %96
    %100 = vset.pattern.permute.xlu0 0
    %101 = vperm.xlu0 %100, %v75
    %v102 = vpop.permute.xlu0 %101
    %105 = vset.pattern.permute.xlu0 0
    %106 = vperm.xlu0 %105, %v76
    %v107 = vpop.permute.xlu0 %106
    %110 = vset.pattern.permute.xlu0 0
    %111 = vperm.xlu0 %110, %v77
    %v112 = vpop.permute.xlu0 %111
    %115 = vset.pattern.permute.xlu0 0
    %116 = vperm.xlu0 %115, %v78
    %v117 = vpop.permute.xlu0 %116
    %120 = vset.pattern.permute.xlu0 0
    %121 = vperm.xlu0 %120, %v79
    %v122 = vpop.permute.xlu0 %121
    %125 = vset.pattern.permute.xlu0 0
    %126 = vperm.xlu0 %125, %v80
    %v127 = vpop.permute.xlu0 %126
    %130 = vset.pattern.permute.xlu0 0
    %131 = vperm.xlu0 %130, %v81
    %v132 = vpop.permute.xlu0 %131
    %135 = vset.pattern.permute.xlu0 0
    %136 = vperm.xlu0 %135, %v82
    %v137 = vpop.permute.xlu0 %136
    %140 = vset.pattern.permute.xlu0 0
    %141 = vperm.xlu0 %140, %v83
    %v142 = vpop.permute.xlu0 %141
    %v156 = vunpack.c.l.b16 %v60
    %v157 = vunpack.c.l.b16 %v61
    %v158 = vunpack.c.l.b16 %v62
    %v159 = vunpack.c.l.b16 %v63
    %v160 = vunpack.c.l.b16 %v64
    %v161 = vunpack.c.l.b16 %v65
    %v162 = vunpack.c.l.b16 %v66
    %v163 = vunpack.c.l.b16 %v67
    %v164 = vunpack.c.l.b16 %v68
    %v165 = vunpack.c.l.b16 %v69
    %v166 = vunpack.c.l.b16 %v70
    %v167 = vunpack.c.l.b16 %v71
    %v168 = vpack.c.b16 %v157, %v156
    %v169 = vpack.c.b16 %v159, %v158
    %v170 = vpack.c.b16 %v161, %v160
    %v171 = vpack.c.b16 %v163, %v162
    %v172 = vpack.c.b16 %v165, %v164
    %v173 = vpack.c.b16 %v167, %v166
    %v186 = vunpack.c.l.b16 %v46
    %v187 = vunpack.c.l.b16 %v47
    %v188 = vunpack.c.l.b16 %v48
    %v189 = vunpack.c.l.b16 %v49
    %v190 = vunpack.c.l.b16 %v50
    %v191 = vunpack.c.l.b16 %v51
    %v192 = vunpack.c.l.b16 %v52
    %v193 = vunpack.c.l.b16 %v53
    %v194 = vunpack.c.l.b16 %v54
    %v195 = vunpack.c.l.b16 %v55
    %v196 = vunpack.c.l.b16 %v56
    %v197 = vunpack.c.l.b16 %v57
    %v198 = vpack.c.b16 %v187, %v186
    %v199 = vpack.c.b16 %v189, %v188
    %v200 = vpack.c.b16 %v191, %v190
    %v201 = vpack.c.b16 %v193, %v192
    %v202 = vpack.c.b16 %v195, %v194
    %v203 = vpack.c.b16 %v197, %v196
    %vm210 = vcmask 785408
    %v212 = vsel %vm210, %v168, 0
    %v215 = vsel %vm210, %v169, 0
    %v218 = vsel %vm210, %v170, 0
    %v221 = vsel %vm210, %v171, 0
    %v224 = vsel %vm210, %v172, 0
    %v227 = vsel %vm210, %v173, 0
    %229 = vmatprep.subr.bf16.mxu0 0
    %230 = vmatpush1.bf16.msra.mxu0 0
    %231 = vmatprep.subr.bf16.mxu0 0
    %232 = vmatpush1.bf16.msra.mxu0 0
    %233 = vmatprep.subr.bf16.mxu0 0
    %234 = vmatpush1.bf16.msra.mxu0 %v203
    %235 = vmatprep.subr.bf16.mxu0 0
    %236 = vmatpush1.bf16.msra.mxu0 %v202
    %237 = vmatprep.subr.bf16.mxu0 0
    %238 = vmatpush1.bf16.msra.mxu0 %v201
    %239 = vmatprep.subr.bf16.mxu0 0
    %240 = vmatpush1.bf16.msra.mxu0 %v200
    %241 = vmatprep.subr.bf16.mxu0 0
    %242 = vmatpush1.bf16.msra.mxu0 %v199
    %243 = vmatprep.subr.bf16.mxu0 0
    %244 = vmatpush1.bf16.msra.mxu0 %v198
    %245 = vmatprep.subr.bf16.mxu0 0
    %246 = vmatpush2.bf16.msra.mxu0 0
    %247 = vmatprep.subr.bf16.mxu0 0
    %248 = vmatpush2.bf16.msra.mxu0 0
    %249 = vmatprep.subr.bf16.mxu0 0
    %250 = vmatpush2.bf16.msra.mxu0 0
    %251 = vmatprep.subr.bf16.mxu0 0
    %252 = vmatpush2.bf16.msra.mxu0 0
    %253 = vmatprep.subr.bf16.mxu0 0
    %254 = vmatpush2.bf16.msra.mxu0 0
    %255 = vmatprep.subr.bf16.mxu0 0
    %256 = vmatpush2.bf16.msra.mxu0 0
    %257 = vmatprep.subr.bf16.mxu0 0
    %258 = vmatpush2.bf16.msra.mxu0 0
    %259 = vmatprep.subr.bf16.mxu0 0
    %260 = vmatpush2.bf16.msra.mxu0 0
    %261 = vmatprep.mubr.bf16.mxu0 0
    %262 = vmatmul.mubr.bf16.gmra.mxu0 %v212
    %v263 = vpop.f32.mrf.mxu0
    %v264 = vadd.f32 %v87, %v263
    %v265 = vpop.f32.mrf.mxu0
    %v266 = vpop.f32.mrf.mxu0
    %v267 = vadd.f32 %v92, %v266
    %v268 = vpop.f32.mrf.mxu0
    %269 = vmatprep.mubr.bf16.mxu0 0
    %270 = vmatmul.mubr.bf16.gmra.mxu0 %v215
    %v271 = vpop.f32.mrf.mxu0
    %v272 = vadd.f32 %v97, %v271
    %v273 = vpop.f32.mrf.mxu0
    %v274 = vpop.f32.mrf.mxu0
    %v275 = vadd.f32 %v102, %v274
    %v276 = vpop.f32.mrf.mxu0
    %277 = vmatprep.mubr.bf16.mxu0 0
    %278 = vmatmul.mubr.bf16.gmra.mxu0 %v218
    %v279 = vpop.f32.mrf.mxu0
    %v280 = vadd.f32 %v107, %v279
    %v281 = vpop.f32.mrf.mxu0
    %v282 = vpop.f32.mrf.mxu0
    %v283 = vadd.f32 %v112, %v282
    %v284 = vpop.f32.mrf.mxu0
    %285 = vmatprep.mubr.bf16.mxu0 0
    %286 = vmatmul.mubr.bf16.gmra.mxu0 %v221
    %v287 = vpop.f32.mrf.mxu0
    %v288 = vadd.f32 %v117, %v287
    %v289 = vpop.f32.mrf.mxu0
    %v290 = vpop.f32.mrf.mxu0
    %v291 = vadd.f32 %v122, %v290
    %v292 = vpop.f32.mrf.mxu0
    %293 = vmatprep.mubr.bf16.mxu0 0
    %294 = vmatmul.mubr.bf16.gmra.mxu0 %v224
    %v295 = vpop.f32.mrf.mxu0
    %v296 = vadd.f32 %v127, %v295
    %v297 = vpop.f32.mrf.mxu0
    %v298 = vpop.f32.mrf.mxu0
    %v299 = vadd.f32 %v132, %v298
    %v300 = vpop.f32.mrf.mxu0
    %301 = vmatprep.mubr.bf16.mxu0 0
    %302 = vmatmul.mubr.bf16.gmra.mxu0 %v227
    %v303 = vpop.f32.mrf.mxu0
    %v304 = vadd.f32 %v137, %v303
    %v305 = vpop.f32.mrf.mxu0
    %v306 = vpop.f32.mrf.mxu0
    %v307 = vadd.f32 %v142, %v306
    %v308 = vpop.f32.mrf.mxu0
    %309 = vdwg.mxu0
    %v310 = vmax.f32 %v264, 0.0
    %v311 = vmax.f32 %v267, 0.0
    %v312 = vmax.f32 %v272, 0.0
    %v313 = vmax.f32 %v275, 0.0
    %v314 = vmax.f32 %v280, 0.0
    %v315 = vmax.f32 %v283, 0.0
    %v316 = vmax.f32 %v288, 0.0
    %v317 = vmax.f32 %v291, 0.0
    %v318 = vmax.f32 %v296, 0.0
    %v319 = vmax.f32 %v299, 0.0
    %v320 = vmax.f32 %v304, 0.0
    %v321 = vmax.f32 %v307, 0.0
    %v322 = vpack.c.bf16 %v311, %v310
    %v323 = vpack.c.bf16 %v313, %v312
    %v324 = vpack.c.bf16 %v315, %v314
    %v325 = vpack.c.bf16 %v317, %v316
    %v326 = vpack.c.bf16 %v319, %v318
    %v327 = vpack.c.bf16 %v321, %v320
    %v328 = vld [vmem:[%s4] sm:$0xf]
    %v329 = vld [vmem:[%s4 + $0x4] sm:$0xf]
    %v330 = vld [vmem:[%s4 + $0x8] sm:$0xf]
    %v331 = vld [vmem:[%s4 + $0xc] sm:$0xf]
    %v332 = vld [vmem:[%s4 + $0x10] sm:$0xf]
    %v333 = vld [vmem:[%s4 + $0x14] sm:$0xf]
    %v334 = vld [vmem:[%s4 + $0x18] sm:$0xf]
    %v335 = vld [vmem:[%s4 + $0x1c] sm:$0xf]
    %v336 = vld [vmem:[%s4 + $0x20] sm:$0xf]
    %v337 = vld [vmem:[%s4 + $0x24] sm:$0xf]
    %v338 = vld [vmem:[%s4 + $0x28] sm:$0xf]
    %v339 = vld [vmem:[%s4 + $0x2c] sm:$0x1]
    %v340 = vld [vmem:[%s5] sm:$0xf]
    %v341 = vld [vmem:[%s5 + $0x4] sm:$0xf]
    %v342 = vld [vmem:[%s5 + $0x8] sm:$0xf]
    %v343 = vld [vmem:[%s5 + $0xc] sm:$0xf]
    %v344 = vld [vmem:[%s5 + $0x10] sm:$0xf]
    %v345 = vld [vmem:[%s5 + $0x14] sm:$0xf]
    %v346 = vld [vmem:[%s5 + $0x18] sm:$0xf]
    %v347 = vld [vmem:[%s5 + $0x1c] sm:$0xf]
    %v348 = vld [vmem:[%s5 + $0x20] sm:$0xf]
    %v349 = vld [vmem:[%s5 + $0x24] sm:$0xf]
    %v350 = vld [vmem:[%s5 + $0x28] sm:$0xf]
    %v351 = vld [vmem:[%s5 + $0x2c] sm:$0x1]
    %v364 = vunpack.c.l.b16 %v340
    %v365 = vunpack.c.l.b16 %v341
    %v366 = vunpack.c.l.b16 %v342
    %v367 = vunpack.c.l.b16 %v343
    %v368 = vunpack.c.l.b16 %v344
    %v369 = vunpack.c.l.b16 %v345
    %v370 = vunpack.c.l.b16 %v346
    %v371 = vunpack.c.l.b16 %v347
    %v372 = vunpack.c.l.b16 %v348
    %v373 = vunpack.c.l.b16 %v349
    %v374 = vunpack.c.l.b16 %v350
    %v375 = vunpack.c.l.b16 %v351
    %v376 = vpack.c.b16 %v365, %v364
    %v377 = vpack.c.b16 %v367, %v366
    %v378 = vpack.c.b16 %v369, %v368
    %v379 = vpack.c.b16 %v371, %v370
    %v380 = vpack.c.b16 %v373, %v372
    %v381 = vpack.c.b16 %v375, %v374
    %v384 = vunpack.c.l.b16 %v58
    %v385 = vunpack.c.l.b16 %v59
    %v386 = vpack.c.b16 %v385, %v384
    %vm387 = vcmask 72704
    %v389 = vsel %vm387, %v376, 0
    %v392 = vsel %vm387, %v377, 0
    %v395 = vsel %vm387, %v378, 0
    %v398 = vsel %vm387, %v379, 0
    %v401 = vsel %vm387, %v380, 0
    %v404 = vsel %vm387, %v381, 0
    %vm406 = vcmask 1043456
    %vm407 = vcmask 1044480
    %v408 = vsel %vm406, 4294967295, 65535
    %v409 = vsel %vm407, %v408, 0
    %v411 = vand.u32 %v386, %v409
    %413 = vmatprep.subr.bf16.mxu0 0
    %414 = vmatpush1.bf16.msra.mxu0 0
    %415 = vmatprep.subr.bf16.mxu0 0
    %416 = vmatpush1.bf16.msra.mxu0 0
    %417 = vmatprep.subr.bf16.mxu0 0
    %418 = vmatpush1.bf16.msra.mxu0 0
    %419 = vmatprep.subr.bf16.mxu0 0
    %420 = vmatpush1.bf16.msra.mxu0 0
    %421 = vmatprep.subr.bf16.mxu0 0
    %422 = vmatpush1.bf16.msra.mxu0 0
    %423 = vmatprep.subr.bf16.mxu0 0
    %424 = vmatpush1.bf16.msra.mxu0 0
    %425 = vmatprep.subr.bf16.mxu0 0
    %426 = vmatpush1.bf16.msra.mxu0 0
    %427 = vmatprep.subr.bf16.mxu0 0
    %428 = vmatpush1.bf16.msra.mxu0 %v411
    %429 = vmatprep.subr.bf16.mxu0 0
    %430 = vmatpush2.bf16.msra.mxu0 0
    %431 = vmatprep.subr.bf16.mxu0 0
    %432 = vmatpush2.bf16.msra.mxu0 0
    %433 = vmatprep.subr.bf16.mxu0 0
    %434 = vmatpush2.bf16.msra.mxu0 0
    %435 = vmatprep.subr.bf16.mxu0 0
    %436 = vmatpush2.bf16.msra.mxu0 0
    %437 = vmatprep.subr.bf16.mxu0 0
    %438 = vmatpush2.bf16.msra.mxu0 0
    %439 = vmatprep.subr.bf16.mxu0 0
    %440 = vmatpush2.bf16.msra.mxu0 0
    %441 = vmatprep.subr.bf16.mxu0 0
    %442 = vmatpush2.bf16.msra.mxu0 0
    %443 = vmatprep.subr.bf16.mxu0 0
    %444 = vmatpush2.bf16.msra.mxu0 0
    %445 = vmatprep.mubr.bf16.mxu0 0
    %446 = vmatmul.mubr.bf16.gmra.mxu0 %v389
    %v447 = vpop.f32.mrf.mxu0
    %v448 = vadd.f32 0.0, %v447
    %v449 = vpop.f32.mrf.mxu0
    %v450 = vpop.f32.mrf.mxu0
    %v451 = vadd.f32 0.0, %v450
    %v452 = vpop.f32.mrf.mxu0
    %453 = vmatprep.mubr.bf16.mxu0 0
    %454 = vmatmul.mubr.bf16.gmra.mxu0 %v392
    %v455 = vpop.f32.mrf.mxu0
    %v456 = vadd.f32 0.0, %v455
    %v457 = vpop.f32.mrf.mxu0
    %v458 = vpop.f32.mrf.mxu0
    %v459 = vadd.f32 0.0, %v458
    %v460 = vpop.f32.mrf.mxu0
    %461 = vmatprep.mubr.bf16.mxu0 0
    %462 = vmatmul.mubr.bf16.gmra.mxu0 %v395
    %v463 = vpop.f32.mrf.mxu0
    %v464 = vadd.f32 0.0, %v463
    %v465 = vpop.f32.mrf.mxu0
    %v466 = vpop.f32.mrf.mxu0
    %v467 = vadd.f32 0.0, %v466
    %v468 = vpop.f32.mrf.mxu0
    %469 = vmatprep.mubr.bf16.mxu0 0
    %470 = vmatmul.mubr.bf16.gmra.mxu0 %v398
    %v471 = vpop.f32.mrf.mxu0
    %v472 = vadd.f32 0.0, %v471
    %v473 = vpop.f32.mrf.mxu0
    %v474 = vpop.f32.mrf.mxu0
    %v475 = vadd.f32 0.0, %v474
    %v476 = vpop.f32.mrf.mxu0
    %477 = vmatprep.mubr.bf16.mxu0 0
    %478 = vmatmul.mubr.bf16.gmra.mxu0 %v401
    %v479 = vpop.f32.mrf.mxu0
    %v480 = vadd.f32 0.0, %v479
    %v481 = vpop.f32.mrf.mxu0
    %v482 = vpop.f32.mrf.mxu0
    %v483 = vadd.f32 0.0, %v482
    %v484 = vpop.f32.mrf.mxu0
    %485 = vmatprep.mubr.bf16.mxu0 0
    %486 = vmatmul.mubr.bf16.gmra.mxu0 %v404
    %v487 = vpop.f32.mrf.mxu0
    %v488 = vadd.f32 0.0, %v487
    %v489 = vpop.f32.mrf.mxu0
    %v490 = vpop.f32.mrf.mxu0
    %v491 = vadd.f32 0.0, %v490
    %v492 = vpop.f32.mrf.mxu0
    %493 = vdwg.mxu0
    %v506 = vunpack.c.l.b16 %v328
    %v507 = vunpack.c.l.b16 %v329
    %v508 = vunpack.c.l.b16 %v330
    %v509 = vunpack.c.l.b16 %v331
    %v510 = vunpack.c.l.b16 %v332
    %v511 = vunpack.c.l.b16 %v333
    %v512 = vunpack.c.l.b16 %v334
    %v513 = vunpack.c.l.b16 %v335
    %v514 = vunpack.c.l.b16 %v336
    %v515 = vunpack.c.l.b16 %v337
    %v516 = vunpack.c.l.b16 %v338
    %v517 = vunpack.c.l.b16 %v339
    %v518 = vpack.c.b16 %v507, %v506
    %v519 = vpack.c.b16 %v509, %v508
    %v520 = vpack.c.b16 %v511, %v510
    %v521 = vpack.c.b16 %v513, %v512
    %v522 = vpack.c.b16 %v515, %v514
    %v523 = vpack.c.b16 %v517, %v516
    %vm524 = vcmask 736256
    %v526 = vsel %vm524, %v518, 0
    %v529 = vsel %vm524, %v519, 0
    %v532 = vsel %vm524, %v520, 0
    %v535 = vsel %vm524, %v521, 0
    %v538 = vsel %vm524, %v522, 0
    %v541 = vsel %vm524, %v523, 0
    %v544 = vsel %vm407, %v327, 0
    %546 = vmatprep.subr.bf16.mxu0 0
    %547 = vmatpush1.bf16.msra.mxu0 0
    %548 = vmatprep.subr.bf16.mxu0 0
    %549 = vmatpush1.bf16.msra.mxu0 0
    %550 = vmatprep.subr.bf16.mxu0 0
    %551 = vmatpush1.bf16.msra.mxu0 %v544
    %552 = vmatprep.subr.bf16.mxu0 0
    %553 = vmatpush1.bf16.msra.mxu0 %v326
    %554 = vmatprep.subr.bf16.mxu0 0
    %555 = vmatpush1.bf16.msra.mxu0 %v325
    %556 = vmatprep.subr.bf16.mxu0 0
    %557 = vmatpush1.bf16.msra.mxu0 %v324
    %558 = vmatprep.subr.bf16.mxu0 0
    %559 = vmatpush1.bf16.msra.mxu0 %v323
    %560 = vmatprep.subr.bf16.mxu0 0
    %561 = vmatpush1.bf16.msra.mxu0 %v322
    %562 = vmatprep.subr.bf16.mxu0 0
    %563 = vmatpush2.bf16.msra.mxu0 0
    %564 = vmatprep.subr.bf16.mxu0 0
    %565 = vmatpush2.bf16.msra.mxu0 0
    %566 = vmatprep.subr.bf16.mxu0 0
    %567 = vmatpush2.bf16.msra.mxu0 0
    %568 = vmatprep.subr.bf16.mxu0 0
    %569 = vmatpush2.bf16.msra.mxu0 0
    %570 = vmatprep.subr.bf16.mxu0 0
    %571 = vmatpush2.bf16.msra.mxu0 0
    %572 = vmatprep.subr.bf16.mxu0 0
    %573 = vmatpush2.bf16.msra.mxu0 0
    %574 = vmatprep.subr.bf16.mxu0 0
    %575 = vmatpush2.bf16.msra.mxu0 0
    %576 = vmatprep.subr.bf16.mxu0 0
    %577 = vmatpush2.bf16.msra.mxu0 0
    %578 = vmatprep.mubr.bf16.mxu0 0
    %579 = vmatmul.mubr.bf16.gmra.mxu0 %v526
    %v580 = vpop.f32.mrf.mxu0
    %v581 = vadd.f32 %v448, %v580
    %v582 = vpop.f32.mrf.mxu0
    %v583 = vpop.f32.mrf.mxu0
    %v584 = vadd.f32 %v451, %v583
    %v585 = vpop.f32.mrf.mxu0
    %586 = vmatprep.mubr.bf16.mxu0 0
    %587 = vmatmul.mubr.bf16.gmra.mxu0 %v529
    %v588 = vpop.f32.mrf.mxu0
    %v589 = vadd.f32 %v456, %v588
    %v590 = vpop.f32.mrf.mxu0
    %v591 = vpop.f32.mrf.mxu0
    %v592 = vadd.f32 %v459, %v591
    %v593 = vpop.f32.mrf.mxu0
    %594 = vmatprep.mubr.bf16.mxu0 0
    %595 = vmatmul.mubr.bf16.gmra.mxu0 %v532
    %v596 = vpop.f32.mrf.mxu0
    %v597 = vadd.f32 %v464, %v596
    %v598 = vpop.f32.mrf.mxu0
    %v599 = vpop.f32.mrf.mxu0
    %v600 = vadd.f32 %v467, %v599
    %v601 = vpop.f32.mrf.mxu0
    %602 = vmatprep.mubr.bf16.mxu0 0
    %603 = vmatmul.mubr.bf16.gmra.mxu0 %v535
    %v604 = vpop.f32.mrf.mxu0
    %v605 = vadd.f32 %v472, %v604
    %v606 = vpop.f32.mrf.mxu0
    %v607 = vpop.f32.mrf.mxu0
    %v608 = vadd.f32 %v475, %v607
    %v609 = vpop.f32.mrf.mxu0
    %610 = vmatprep.mubr.bf16.mxu0 0
    %611 = vmatmul.mubr.bf16.gmra.mxu0 %v538
    %v612 = vpop.f32.mrf.mxu0
    %v613 = vadd.f32 %v480, %v612
    %v614 = vpop.f32.mrf.mxu0
    %v615 = vpop.f32.mrf.mxu0
    %v616 = vadd.f32 %v483, %v615
    %v617 = vpop.f32.mrf.mxu0
    %618 = vmatprep.mubr.bf16.mxu0 0
    %619 = vmatmul.mubr.bf16.gmra.mxu0 %v541
    %v620 = vpop.f32.mrf.mxu0
    %v621 = vadd.f32 %v488, %v620
    %v622 = vpop.f32.mrf.mxu0
    %v623 = vpop.f32.mrf.mxu0
    %v624 = vadd.f32 %v491, %v623
    %v625 = vpop.f32.mrf.mxu0
    %626 = vdwg.mxu0
    %v627 = vld [vmem:[%s6] sm:$0xff]
    %v628 = vld [vmem:[%s6 + $0x8] sm:$0xff]
    %v629 = vld [vmem:[%s6 + $0x10] sm:$0xff]
    %v630 = vld [vmem:[%s6 + $0x18] sm:$0xff]
    %v631 = vld [vmem:[%s6 + $0x20] sm:$0xff]
    %v632 = vld [vmem:[%s6 + $0x28] sm:$0xff]
    %v633 = vld [vmem:[%s6 + $0x30] sm:$0xff]
    %v634 = vld [vmem:[%s6 + $0x38] sm:$0xff]
    %v635 = vld [vmem:[%s6 + $0x40] sm:$0xff]
    %v636 = vld [vmem:[%s6 + $0x48] sm:$0xff]
    %v637 = vld [vmem:[%s6 + $0x50] sm:$0xff]
    %v638 = vld [vmem:[%s6 + $0x58] sm:$0x3]
    %640 = vset.pattern.permute.xlu0 0
    %641 = vperm.xlu0 %640, %v627
    %v642 = vpop.permute.xlu0 %641
    %645 = vset.pattern.permute.xlu0 0
    %646 = vperm.xlu0 %645, %v628
    %v647 = vpop.permute.xlu0 %646
    %650 = vset.pattern.permute.xlu0 0
    %651 = vperm.xlu0 %650, %v629
    %v652 = vpop.permute.xlu0 %651
    %655 = vset.pattern.permute.xlu0 0
    %656 = vperm.xlu0 %655, %v630
    %v657 = vpop.permute.xlu0 %656
    %660 = vset.pattern.permute.xlu0 0
    %661 = vperm.xlu0 %660, %v631
    %v662 = vpop.permute.xlu0 %661
    %665 = vset.pattern.permute.xlu0 0
    %666 = vperm.xlu0 %665, %v632
    %v667 = vpop.permute.xlu0 %666
    %670 = vset.pattern.permute.xlu0 0
    %671 = vperm.xlu0 %670, %v633
    %v672 = vpop.permute.xlu0 %671
    %675 = vset.pattern.permute.xlu0 0
    %676 = vperm.xlu0 %675, %v634
    %v677 = vpop.permute.xlu0 %676
    %680 = vset.pattern.permute.xlu0 0
    %681 = vperm.xlu0 %680, %v635
    %v682 = vpop.permute.xlu0 %681
    %685 = vset.pattern.permute.xlu0 0
    %686 = vperm.xlu0 %685, %v636
    %v687 = vpop.permute.xlu0 %686
    %690 = vset.pattern.permute.xlu0 0
    %691 = vperm.xlu0 %690, %v637
    %v692 = vpop.permute.xlu0 %691
    %695 = vset.pattern.permute.xlu0 0
    %696 = vperm.xlu0 %695, %v638
    %v697 = vpop.permute.xlu0 %696
    %v699 = vadd.f32 %v581, %v642
    %v700 = vadd.f32 %v584, %v647
    %v701 = vadd.f32 %v589, %v652
    %v702 = vadd.f32 %v592, %v657
    %v703 = vadd.f32 %v597, %v662
    %v704 = vadd.f32 %v600, %v667
    %v705 = vadd.f32 %v605, %v672
    %v706 = vadd.f32 %v608, %v677
    %v707 = vadd.f32 %v613, %v682
    %v708 = vadd.f32 %v616, %v687
    %v709 = vadd.f32 %v621, %v692
    %v710 = vadd.f32 %v624, %v697
    %v711 = vmax.f32 %v699, 0.0
    %v712 = vmax.f32 %v700, 0.0
    %v713 = vmax.f32 %v701, 0.0
    %v714 = vmax.f32 %v702, 0.0
    %v715 = vmax.f32 %v703, 0.0
    %v716 = vmax.f32 %v704, 0.0
    %v717 = vmax.f32 %v705, 0.0
    %v718 = vmax.f32 %v706, 0.0
    %v719 = vmax.f32 %v707, 0.0
    %v720 = vmax.f32 %v708, 0.0
    %v721 = vmax.f32 %v709, 0.0
    %v722 = vmax.f32 %v710, 0.0
    %v723 = vpack.c.bf16 %v712, %v711
    %v724 = vpack.c.bf16 %v714, %v713
    %v725 = vpack.c.bf16 %v716, %v715
    %v726 = vpack.c.bf16 %v718, %v717
    %v727 = vpack.c.bf16 %v720, %v719
    %v728 = vpack.c.bf16 %v722, %v721
    %v729 = vld [vmem:[%s7] sm:$0xf]
    %v730 = vld [vmem:[%s7 + $0x4] sm:$0xf]
    %v731 = vld [vmem:[%s7 + $0x8] sm:$0xf]
    %v732 = vld [vmem:[%s7 + $0xc] sm:$0xf]
    %v733 = vld [vmem:[%s7 + $0x10] sm:$0xf]
    %v734 = vld [vmem:[%s7 + $0x14] sm:$0xf]
    %v735 = vld [vmem:[%s7 + $0x18] sm:$0xf]
    %v736 = vld [vmem:[%s7 + $0x1c] sm:$0xf]
    %v737 = vld [vmem:[%s7 + $0x20] sm:$0xf]
    %v738 = vld [vmem:[%s7 + $0x24] sm:$0xf]
    %v739 = vld [vmem:[%s7 + $0x28] sm:$0xf]
    %v740 = vld [vmem:[%s7 + $0x2c] sm:$0x1]
    %v741 = vld [vmem:[%s8] sm:$0xff]
    %v742 = vld [vmem:[%s8 + $0x8] sm:$0xff]
    %v743 = vld [vmem:[%s8 + $0x10] sm:$0xff]
    %v744 = vld [vmem:[%s8 + $0x18] sm:$0xff]
    %v745 = vld [vmem:[%s8 + $0x20] sm:$0xff]
    %v746 = vld [vmem:[%s8 + $0x28] sm:$0xff]
    %v747 = vld [vmem:[%s8 + $0x30] sm:$0xff]
    %v748 = vld [vmem:[%s8 + $0x38] sm:$0xff]
    %v749 = vld [vmem:[%s8 + $0x40] sm:$0xff]
    %v750 = vld [vmem:[%s8 + $0x48] sm:$0xff]
    %v751 = vld [vmem:[%s8 + $0x50] sm:$0xff]
    %v752 = vld [vmem:[%s8 + $0x58] sm:$0x3]
    %754 = vset.pattern.permute.xlu0 0
    %755 = vperm.xlu0 %754, %v741
    %v756 = vpop.permute.xlu0 %755
    %759 = vset.pattern.permute.xlu0 0
    %760 = vperm.xlu0 %759, %v742
    %v761 = vpop.permute.xlu0 %760
    %764 = vset.pattern.permute.xlu0 0
    %765 = vperm.xlu0 %764, %v743
    %v766 = vpop.permute.xlu0 %765
    %769 = vset.pattern.permute.xlu0 0
    %770 = vperm.xlu0 %769, %v744
    %v771 = vpop.permute.xlu0 %770
    %774 = vset.pattern.permute.xlu0 0
    %775 = vperm.xlu0 %774, %v745
    %v776 = vpop.permute.xlu0 %775
    %779 = vset.pattern.permute.xlu0 0
    %780 = vperm.xlu0 %779, %v746
    %v781 = vpop.permute.xlu0 %780
    %784 = vset.pattern.permute.xlu0 0
    %785 = vperm.xlu0 %784, %v747
    %v786 = vpop.permute.xlu0 %785
    %789 = vset.pattern.permute.xlu0 0
    %790 = vperm.xlu0 %789, %v748
    %v791 = vpop.permute.xlu0 %790
    %794 = vset.pattern.permute.xlu0 0
    %795 = vperm.xlu0 %794, %v749
    %v796 = vpop.permute.xlu0 %795
    %799 = vset.pattern.permute.xlu0 0
    %800 = vperm.xlu0 %799, %v750
    %v801 = vpop.permute.xlu0 %800
    %804 = vset.pattern.permute.xlu0 0
    %805 = vperm.xlu0 %804, %v751
    %v806 = vpop.permute.xlu0 %805
    %809 = vset.pattern.permute.xlu0 0
    %810 = vperm.xlu0 %809, %v752
    %v811 = vpop.permute.xlu0 %810
    %v825 = vunpack.c.l.b16 %v729
    %v826 = vunpack.c.l.b16 %v730
    %v827 = vunpack.c.l.b16 %v731
    %v828 = vunpack.c.l.b16 %v732
    %v829 = vunpack.c.l.b16 %v733
    %v830 = vunpack.c.l.b16 %v734
    %v831 = vunpack.c.l.b16 %v735
    %v832 = vunpack.c.l.b16 %v736
    %v833 = vunpack.c.l.b16 %v737
    %v834 = vunpack.c.l.b16 %v738
    %v835 = vunpack.c.l.b16 %v739
    %v836 = vunpack.c.l.b16 %v740
    %v837 = vpack.c.b16 %v826, %v825
    %v838 = vpack.c.b16 %v828, %v827
    %v839 = vpack.c.b16 %v830, %v829
    %v840 = vpack.c.b16 %v832, %v831
    %v841 = vpack.c.b16 %v834, %v833
    %v842 = vpack.c.b16 %v836, %v835
    %v844 = vsel %vm524, %v837, 0
    %v847 = vsel %vm524, %v838, 0
    %v850 = vsel %vm524, %v839, 0
    %v853 = vsel %vm524, %v840, 0
    %v856 = vsel %vm524, %v841, 0
    %v859 = vsel %vm524, %v842, 0
    %v862 = vsel %vm407, %v728, 0
    %864 = vmatprep.subr.bf16.mxu0 0
    %865 = vmatpush1.bf16.msra.mxu0 0
    %866 = vmatprep.subr.bf16.mxu0 0
    %867 = vmatpush1.bf16.msra.mxu0 0
    %868 = vmatprep.subr.bf16.mxu0 0
    %869 = vmatpush1.bf16.msra.mxu0 %v862
    %870 = vmatprep.subr.bf16.mxu0 0
    %871 = vmatpush1.bf16.msra.mxu0 %v727
    %872 = vmatprep.subr.bf16.mxu0 0
    %873 = vmatpush1.bf16.msra.mxu0 %v726
    %874 = vmatprep.subr.bf16.mxu0 0
    %875 = vmatpush1.bf16.msra.mxu0 %v725
    %876 = vmatprep.subr.bf16.mxu0 0
    %877 = vmatpush1.bf16.msra.mxu0 %v724
    %878 = vmatprep.subr.bf16.mxu0 0
    %879 = vmatpush1.bf16.msra.mxu0 %v723
    %880 = vmatprep.subr.bf16.mxu0 0
    %881 = vmatpush2.bf16.msra.mxu0 0
    %882 = vmatprep.subr.bf16.mxu0 0
    %883 = vmatpush2.bf16.msra.mxu0 0
    %884 = vmatprep.subr.bf16.mxu0 0
    %885 = vmatpush2.bf16.msra.mxu0 0
    %886 = vmatprep.subr.bf16.mxu0 0
    %887 = vmatpush2.bf16.msra.mxu0 0
    %888 = vmatprep.subr.bf16.mxu0 0
    %889 = vmatpush2.bf16.msra.mxu0 0
    %890 = vmatprep.subr.bf16.mxu0 0
    %891 = vmatpush2.bf16.msra.mxu0 0
    %892 = vmatprep.subr.bf16.mxu0 0
    %893 = vmatpush2.bf16.msra.mxu0 0
    %894 = vmatprep.subr.bf16.mxu0 0
    %895 = vmatpush2.bf16.msra.mxu0 0
    %896 = vmatprep.mubr.bf16.mxu0 0
    %897 = vmatmul.mubr.bf16.gmra.mxu0 %v844
    %v898 = vpop.f32.mrf.mxu0
    %v899 = vadd.f32 %v756, %v898
    %v900 = vpop.f32.mrf.mxu0
    %v901 = vpop.f32.mrf.mxu0
    %v902 = vadd.f32 %v761, %v901
    %v903 = vpop.f32.mrf.mxu0
    %904 = vmatprep.mubr.bf16.mxu0 0
    %905 = vmatmul.mubr.bf16.gmra.mxu0 %v847
    %v906 = vpop.f32.mrf.mxu0
    %v907 = vadd.f32 %v766, %v906
    %v908 = vpop.f32.mrf.mxu0
    %v909 = vpop.f32.mrf.mxu0
    %v910 = vadd.f32 %v771, %v909
    %v911 = vpop.f32.mrf.mxu0
    %912 = vmatprep.mubr.bf16.mxu0 0
    %913 = vmatmul.mubr.bf16.gmra.mxu0 %v850
    %v914 = vpop.f32.mrf.mxu0
    %v915 = vadd.f32 %v776, %v914
    %v916 = vpop.f32.mrf.mxu0
    %v917 = vpop.f32.mrf.mxu0
    %v918 = vadd.f32 %v781, %v917
    %v919 = vpop.f32.mrf.mxu0
    %920 = vmatprep.mubr.bf16.mxu0 0
    %921 = vmatmul.mubr.bf16.gmra.mxu0 %v853
    %v922 = vpop.f32.mrf.mxu0
    %v923 = vadd.f32 %v786, %v922
    %v924 = vpop.f32.mrf.mxu0
    %v925 = vpop.f32.mrf.mxu0
    %v926 = vadd.f32 %v791, %v925
    %v927 = vpop.f32.mrf.mxu0
    %928 = vmatprep.mubr.bf16.mxu0 0
    %929 = vmatmul.mubr.bf16.gmra.mxu0 %v856
    %v930 = vpop.f32.mrf.mxu0
    %v931 = vadd.f32 %v796, %v930
    %v932 = vpop.f32.mrf.mxu0
    %v933 = vpop.f32.mrf.mxu0
    %v934 = vadd.f32 %v801, %v933
    %v935 = vpop.f32.mrf.mxu0
    %936 = vmatprep.mubr.bf16.mxu0 0
    %937 = vmatmul.mubr.bf16.gmra.mxu0 %v859
    %v938 = vpop.f32.mrf.mxu0
    %v939 = vadd.f32 %v806, %v938
    %v940 = vpop.f32.mrf.mxu0
    %v941 = vpop.f32.mrf.mxu0
    %v942 = vadd.f32 %v811, %v941
    %v943 = vpop.f32.mrf.mxu0
    %944 = vdwg.mxu0
    %v945 = vmax.f32 %v899, 0.0
    %v946 = vmax.f32 %v902, 0.0
    %v947 = vmax.f32 %v907, 0.0
    %v948 = vmax.f32 %v910, 0.0
    %v949 = vmax.f32 %v915, 0.0
    %v950 = vmax.f32 %v918, 0.0
    %v951 = vmax.f32 %v923, 0.0
    %v952 = vmax.f32 %v926, 0.0
    %v953 = vmax.f32 %v931, 0.0
    %v954 = vmax.f32 %v934, 0.0
    %v955 = vmax.f32 %v939, 0.0
    %v956 = vmax.f32 %v942, 0.0
    %v957 = vpack.c.bf16 %v946, %v945
    %v958 = vpack.c.bf16 %v948, %v947
    %v959 = vpack.c.bf16 %v950, %v949
    %v960 = vpack.c.bf16 %v952, %v951
    %v961 = vpack.c.bf16 %v954, %v953
    %v962 = vpack.c.bf16 %v956, %v955
    %v963 = vld [vmem:[%s9] sm:$0xf]
    %v964 = vld [vmem:[%s9 + $0x4] sm:$0xf]
    %v965 = vld [vmem:[%s9 + $0x8] sm:$0xf]
    %v966 = vld [vmem:[%s9 + $0xc] sm:$0xf]
    %v967 = vld [vmem:[%s9 + $0x10] sm:$0xf]
    %v968 = vld [vmem:[%s9 + $0x14] sm:$0xf]
    %v969 = vld [vmem:[%s9 + $0x18] sm:$0xf]
    %v970 = vld [vmem:[%s9 + $0x1c] sm:$0x3]
    %v971 = vld [vmem:[%s10] sm:$0xff]
    %v972 = vld [vmem:[%s10 + $0x8] sm:$0xff]
    %v973 = vld [vmem:[%s10 + $0x10] sm:$0xff]
    %v974 = vld [vmem:[%s10 + $0x18] sm:$0xff]
    %v975 = vld [vmem:[%s10 + $0x20] sm:$0xff]
    %v976 = vld [vmem:[%s10 + $0x28] sm:$0xff]
    %v977 = vld [vmem:[%s10 + $0x30] sm:$0xff]
    %v978 = vld [vmem:[%s10 + $0x38] sm:$0xf]
    %980 = vset.pattern.permute.xlu0 0
    %981 = vperm.xlu0 %980, %v971
    %v982 = vpop.permute.xlu0 %981
    %985 = vset.pattern.permute.xlu0 0
    %986 = vperm.xlu0 %985, %v972
    %v987 = vpop.permute.xlu0 %986
    %990 = vset.pattern.permute.xlu0 0
    %991 = vperm.xlu0 %990, %v973
    %v992 = vpop.permute.xlu0 %991
    %995 = vset.pattern.permute.xlu0 0
    %996 = vperm.xlu0 %995, %v974
    %v997 = vpop.permute.xlu0 %996
    %1000 = vset.pattern.permute.xlu0 0
    %1001 = vperm.xlu0 %1000, %v975
    %v1002 = vpop.permute.xlu0 %1001
    %1005 = vset.pattern.permute.xlu0 0
    %1006 = vperm.xlu0 %1005, %v976
    %v1007 = vpop.permute.xlu0 %1006
    %1010 = vset.pattern.permute.xlu0 0
    %1011 = vperm.xlu0 %1010, %v977
    %v1012 = vpop.permute.xlu0 %1011
    %1015 = vset.pattern.permute.xlu0 0
    %1016 = vperm.xlu0 %1015, %v978
    %v1017 = vpop.permute.xlu0 %1016
    %v1027 = vunpack.c.l.b16 %v963
    %v1028 = vunpack.c.l.b16 %v964
    %v1029 = vunpack.c.l.b16 %v965
    %v1030 = vunpack.c.l.b16 %v966
    %v1031 = vunpack.c.l.b16 %v967
    %v1032 = vunpack.c.l.b16 %v968
    %v1033 = vunpack.c.l.b16 %v969
    %v1034 = vunpack.c.l.b16 %v970
    %v1035 = vpack.c.b16 %v1028, %v1027
    %v1036 = vpack.c.b16 %v1030, %v1029
    %v1037 = vpack.c.b16 %v1032, %v1031
    %v1038 = vpack.c.b16 %v1034, %v1033
    %v1040 = vsel %vm524, %v1035, 0
    %v1043 = vsel %vm524, %v1036, 0
    %v1046 = vsel %vm524, %v1037, 0
    %v1049 = vsel %vm524, %v1038, 0
    %v1052 = vsel %vm407, %v962, 0
    %1054 = vmatprep.subr.bf16.mxu0 0
    %1055 = vmatpush1.bf16.msra.mxu0 0
    %1056 = vmatprep.subr.bf16.mxu0 0
    %1057 = vmatpush1.bf16.msra.mxu0 0
    %1058 = vmatprep.subr.bf16.mxu0 0
    %1059 = vmatpush1.bf16.msra.mxu0 %v1052
    %1060 = vmatprep.subr.bf16.mxu0 0
    %1061 = vmatpush1.bf16.msra.mxu0 %v961
    %1062 = vmatprep.subr.bf16.mxu0 0
    %1063 = vmatpush1.bf16.msra.mxu0 %v960
    %1064 = vmatprep.subr.bf16.mxu0 0
    %1065 = vmatpush1.bf16.msra.mxu0 %v959
    %1066 = vmatprep.subr.bf16.mxu0 0
    %1067 = vmatpush1.bf16.msra.mxu0 %v958
    %1068 = vmatprep.subr.bf16.mxu0 0
    %1069 = vmatpush1.bf16.msra.mxu0 %v957
    %1070 = vmatprep.subr.bf16.mxu0 0
    %1071 = vmatpush2.bf16.msra.mxu0 0
    %1072 = vmatprep.subr.bf16.mxu0 0
    %1073 = vmatpush2.bf16.msra.mxu0 0
    %1074 = vmatprep.subr.bf16.mxu0 0
    %1075 = vmatpush2.bf16.msra.mxu0 0
    %1076 = vmatprep.subr.bf16.mxu0 0
    %1077 = vmatpush2.bf16.msra.mxu0 0
    %1078 = vmatprep.subr.bf16.mxu0 0
    %1079 = vmatpush2.bf16.msra.mxu0 0
    %1080 = vmatprep.subr.bf16.mxu0 0
    %1081 = vmatpush2.bf16.msra.mxu0 0
    %1082 = vmatprep.subr.bf16.mxu0 0
    %1083 = vmatpush2.bf16.msra.mxu0 0
    %1084 = vmatprep.subr.bf16.mxu0 0
    %1085 = vmatpush2.bf16.msra.mxu0 0
    %1086 = vmatprep.mubr.bf16.mxu0 0
    %1087 = vmatmul.mubr.bf16.gmra.mxu0 %v1040
    %v1088 = vpop.f32.mrf.mxu0
    %v1089 = vadd.f32 %v982, %v1088
    %v1090 = vpop.f32.mrf.mxu0
    %v1091 = vpop.f32.mrf.mxu0
    %v1092 = vadd.f32 %v987, %v1091
    %v1093 = vpop.f32.mrf.mxu0
    %1094 = vmatprep.mubr.bf16.mxu0 0
    %1095 = vmatmul.mubr.bf16.gmra.mxu0 %v1043
    %v1096 = vpop.f32.mrf.mxu0
    %v1097 = vadd.f32 %v992, %v1096
    %v1098 = vpop.f32.mrf.mxu0
    %v1099 = vpop.f32.mrf.mxu0
    %v1100 = vadd.f32 %v997, %v1099
    %v1101 = vpop.f32.mrf.mxu0
    %1102 = vmatprep.mubr.bf16.mxu0 0
    %1103 = vmatmul.mubr.bf16.gmra.mxu0 %v1046
    %v1104 = vpop.f32.mrf.mxu0
    %v1105 = vadd.f32 %v1002, %v1104
    %v1106 = vpop.f32.mrf.mxu0
    %v1107 = vpop.f32.mrf.mxu0
    %v1108 = vadd.f32 %v1007, %v1107
    %v1109 = vpop.f32.mrf.mxu0
    %1110 = vmatprep.mubr.bf16.mxu0 0
    %1111 = vmatmul.mubr.bf16.gmra.mxu0 %v1049
    %v1112 = vpop.f32.mrf.mxu0
    %v1113 = vadd.f32 %v1012, %v1112
    %v1114 = vpop.f32.mrf.mxu0
    %v1115 = vpop.f32.mrf.mxu0
    %v1116 = vadd.f32 %v1017, %v1115
    %v1117 = vpop.f32.mrf.mxu0
    %1118 = vdwg.mxu0
    %v1119 = vmax.f32 %v1089, 0.0
    %v1120 = vmax.f32 %v1092, 0.0
    %v1121 = vmax.f32 %v1097, 0.0
    %v1122 = vmax.f32 %v1100, 0.0
    %v1123 = vmax.f32 %v1105, 0.0
    %v1124 = vmax.f32 %v1108, 0.0
    %v1125 = vmax.f32 %v1113, 0.0
    %v1126 = vmax.f32 %v1116, 0.0
    %v1127 = vpack.c.bf16 %v1120, %v1119
    %v1128 = vpack.c.bf16 %v1122, %v1121
    %v1129 = vpack.c.bf16 %v1124, %v1123
    %v1130 = vpack.c.bf16 %v1126, %v1125
    %v1131 = vld [vmem:[%s11] sm:$0xf]
    %v1132 = vld [vmem:[%s11 + $0x4] sm:$0xf]
    %v1133 = vld [vmem:[%s12] sm:$0xff]
    %v1134 = vld [vmem:[%s12 + $0x8] sm:$0x7f]
    %1136 = vset.pattern.permute.xlu0 0
    %1137 = vperm.xlu0 %1136, %v1133
    %v1138 = vpop.permute.xlu0 %1137
    %1141 = vset.pattern.permute.xlu0 0
    %1142 = vperm.xlu0 %1141, %v1134
    %v1143 = vpop.permute.xlu0 %1142
    %v1147 = vunpack.c.l.b16 %v1131
    %v1148 = vunpack.c.l.b16 %v1132
    %v1149 = vpack.c.b16 %v1148, %v1147
    %vm1150 = vcmask 490496
    %v1152 = vsel %vm1150, %v1149, 0
    %vm1154 = vcmask 1045504
    %v1156 = vsel %vm1154, %v1130, 0
    %1158 = vmatprep.subr.bf16.mxu0 0
    %1159 = vmatpush1.bf16.msra.mxu0 0
    %1160 = vmatprep.subr.bf16.mxu0 0
    %1161 = vmatpush1.bf16.msra.mxu0 0
    %1162 = vmatprep.subr.bf16.mxu0 0
    %1163 = vmatpush1.bf16.msra.mxu0 0
    %1164 = vmatprep.subr.bf16.mxu0 0
    %1165 = vmatpush1.bf16.msra.mxu0 0
    %1166 = vmatprep.subr.bf16.mxu0 0
    %1167 = vmatpush1.bf16.msra.mxu0 %v1156
    %1168 = vmatprep.subr.bf16.mxu0 0
    %1169 = vmatpush1.bf16.msra.mxu0 %v1129
    %1170 = vmatprep.subr.bf16.mxu0 0
    %1171 = vmatpush1.bf16.msra.mxu0 %v1128
    %1172 = vmatprep.subr.bf16.mxu0 0
    %1173 = vmatpush1.bf16.msra.mxu0 %v1127
    %1174 = vmatprep.subr.bf16.mxu0 0
    %1175 = vmatpush2.bf16.msra.mxu0 0
    %1176 = vmatprep.subr.bf16.mxu0 0
    %1177 = vmatpush2.bf16.msra.mxu0 0
    %1178 = vmatprep.subr.bf16.mxu0 0
    %1179 = vmatpush2.bf16.msra.mxu0 0
    %1180 = vmatprep.subr.bf16.mxu0 0
    %1181 = vmatpush2.bf16.msra.mxu0 0
    %1182 = vmatprep.subr.bf16.mxu0 0
    %1183 = vmatpush2.bf16.msra.mxu0 0
    %1184 = vmatprep.subr.bf16.mxu0 0
    %1185 = vmatpush2.bf16.msra.mxu0 0
    %1186 = vmatprep.subr.bf16.mxu0 0
    %1187 = vmatpush2.bf16.msra.mxu0 0
    %1188 = vmatprep.subr.bf16.mxu0 0
    %1189 = vmatpush2.bf16.msra.mxu0 0
    %1190 = vmatprep.mubr.bf16.mxu0 0
    %1191 = vmatmul.mubr.bf16.gmra.mxu0 %v1152
    %v1192 = vpop.f32.mrf.mxu0
    %v1193 = vadd.f32 %v1138, %v1192
    %v1194 = vpop.f32.mrf.mxu0
    %v1195 = vpop.f32.mrf.mxu0
    %v1196 = vadd.f32 %v1143, %v1195
    %v1197 = vpop.f32.mrf.mxu0
    %1198 = vdwg.mxu0
    %1199 = vst [vmem:[#allocation2] sm:$0xff] %v1193
    %1200 = vst [vmem:[#allocation2 + $0x8] sm:$0x7f] %v1196
    // Predicated region
    $region54: #{tpu_custom_call.1} parent=1 // pred_check
      _
    $region55: #{tpu_custom_call.1} parent=1 // pred_check_branch
      %1202 = sbr.rel (0) target = $region57
    $region56: #{tpu_custom_call.1} parent=1 // pred_region
      %s1204 = ssub.s32 256, 256
      %1205 = vsyncadd [#allocation3], %s1204
      %s1206 = sshll.u32 [#allocation2], 4
      %s1207 = int_to_ptr.vmem [resolvable:$true] %s1206
      %1212 = dma.vmem_to_hbm [thread:$0]  %s1207, 256, %s13, [#allocation3], 128, 128, 8
    $region57: #{tpu_custom_call.1} parent=1 // pred_fallthru
      _
    // Predicated region
    $region58: #{tpu_custom_call.1} parent=1 // pred_check
      _
    $region59: #{tpu_custom_call.1} parent=1 // pred_check_branch
      %1214 = sbr.rel (0) target = $region61
    $region60: #{tpu_custom_call.1} parent=1 // pred_region
      %1215 = dma.done [#allocation3], 256
    $region61: #{tpu_custom_call.1} parent=1 // pred_fallthru
      _
    %1216 = vsyncpa [#allocation3], 1

</llo_original>
